<compile_context>
chip_gen: v7x
topology: tpu7x:2x2x1
jax: 0.10.0
libtpu: 0.0.40
codegen_flags: <defaults>
</compile_context>

<pallas_src>
import functools

import jax
import jax.numpy as jnp
from jax.experimental import pallas as pl
from jax.experimental.pallas import tpu as pltpu

BN_EPS = 1e-5
VMEM_LIMIT_BYTES = 48 * 1024 * 1024  # explicit; leaves headroom (v7x: 64 MiB)


def _round_up(x, m):
    return (x + m - 1) // m * m


# ---------------------------------------------------------------------------
# Pallas kernels
# ---------------------------------------------------------------------------
def matmul_stats_kernel(p_ref, w_ref, y_ref, sum_ref, sq_ref):
    """One M-tile: y = p @ w (bf16 operands, f32 accumulation) plus the
    per-tile, per-channel sum and sum-of-squares needed for global BN stats.
    Stats are computed from the f32 accumulator; y is stored bf16."""
    y = jnp.dot(p_ref[...], w_ref[...], preferred_element_type=jnp.float32)
    sum_ref[...] = jnp.sum(y, axis=0, keepdims=True)[None]       # (1, 1, C)
    sq_ref[...] = jnp.sum(y * y, axis=0, keepdims=True)[None]    # (1, 1, C)
    y_ref[...] = y.astype(y_ref.dtype)


def scale_shift_relu_kernel(y_ref, scale_ref, shift_ref, o_ref):
    """Apply the folded BatchNorm (one FMA per element) and ReLU."""
    y = y_ref[...].astype(jnp.float32)
    o_ref[...] = jnp.maximum(y * scale_ref[...] + shift_ref[...], 0.0)


# ---------------------------------------------------------------------------
# Plain-JAX glue: layout conversion, im2col, weight reshaping
# ---------------------------------------------------------------------------
def im2col_3x3(x_nhwc):
    """3x3 / stride 1 / pad 1 patches -> (N*H*W, 9*C), tap-major, channel-minor."""
    N, H, W, C = x_nhwc.shape
    xp = jnp.pad(x_nhwc, ((0, 0), (1, 1), (1, 1), (0, 0)))
    cols = [xp[:, dh:dh + H, dw:dw + W, :] for dh in range(3) for dw in range(3)]
    return jnp.concatenate(cols, axis=-1).reshape(N * H * W, 9 * C)


def conv_w_to_2d(w_oihw):
    """PyTorch (Cout, Cin, 3, 3) -> (9*Cin, Cout), matching im2col ordering."""
    co, ci, kh, kw = w_oihw.shape
    return jnp.transpose(w_oihw, (2, 3, 1, 0)).reshape(kh * kw * ci, co)


# ---------------------------------------------------------------------------
# Forward pass
# ---------------------------------------------------------------------------
def conv_bn_relu_forward(x_nchw, w_oihw, gamma, beta, *, tm=512):
    N, Cin, H, W = x_nchw.shape
    Cout = w_oihw.shape[0]

    # NHWC, cast to bf16 up front so im2col (pad/concat) is done in bf16.
    x = jnp.transpose(x_nchw, (0, 2, 3, 1)).astype(jnp.bfloat16)

    M = N * H * W
    K = 9 * Cin
    tm = max(8, (int(tm) // 8) * 8)
    tm = min(tm, _round_up(M, 8))
    M_pad = _round_up(M, tm)
    K_pad = _round_up(K, 128)          # lane-dense / full MXU contraction
    C_pad = _round_up(Cout, 128)       # lane-dense output stores
    n_tiles = M_pad // tm

    # im2col in plain JAX (bf16), zero-padded along M and K.  Padded rows and
    # padded contraction columns are exact zeros, so they add 0 to the matmul
    # and 0 to the BN sums.
    patches = im2col_3x3(x)
    p = jnp.pad(patches, ((0, M_pad - M), (0, K_pad - K)))
    w2d = jnp.pad(conv_w_to_2d(w_oihw).astype(jnp.bfloat16),
                  ((0, K_pad - K), (0, C_pad - Cout)))

    # --- pass 1: tiled matmul + per-tile channel statistics ----------------
    y, sums, sqs = pl.pallas_call(
        matmul_stats_kernel,
        grid=(n_tiles,),
        in_specs=[
            pl.BlockSpec((tm, K_pad), lambda i: (i, 0)),
            pl.BlockSpec((K_pad, C_pad), lambda i: (0, 0)),   # resident weights
        ],
        out_specs=(
            pl.BlockSpec((tm, C_pad), lambda i: (i, 0)),
            pl.BlockSpec((1, 1, C_pad), lambda i: (i, 0, 0)),
            pl.BlockSpec((1, 1, C_pad), lambda i: (i, 0, 0)),
        ),
        out_shape=(
            jax.ShapeDtypeStruct((M_pad, C_pad), jnp.bfloat16),   # bf16 intermediate
            jax.ShapeDtypeStruct((n_tiles, 1, C_pad), jnp.float32),
            jax.ShapeDtypeStruct((n_tiles, 1, C_pad), jnp.float32),
        ),
        compiler_params=pltpu.CompilerParams(
            dimension_semantics=("parallel",),
            vmem_limit_bytes=VMEM_LIMIT_BYTES),
        cost_estimate=pl.CostEstimate(
            flops=2 * M_pad * K_pad * C_pad,
            transcendentals=0,
            bytes_accessed=(M_pad * K_pad * 2 + K_pad * C_pad * 2 +
                            M_pad * C_pad * 2 + 2 * n_tiles * C_pad * 4)),
    )(p, w2d)

    # --- finalize BatchNorm statistics (tiny cross-tile reduce in JAX) -----
    mean = jnp.sum(sums[:, 0, :], axis=0) / M
    msq = jnp.sum(sqs[:, 0, :], axis=0) / M
    var = jnp.maximum(msq - mean * mean, 0.0)          # biased var (training BN)
    gamma_p = jnp.pad(gamma.astype(jnp.float32), (0, C_pad - Cout),
                      constant_values=1.0)
    beta_p = jnp.pad(beta.astype(jnp.float32), (0, C_pad - Cout))
    scale = gamma_p * jax.lax.rsqrt(var + BN_EPS)
    shift = beta_p - mean * scale
    scale = scale.reshape(1, C_pad)
    shift = shift.reshape(1, C_pad)

    # --- pass 2: folded BN (single FMA) + ReLU, lane-wide elementwise ------
    out = pl.pallas_call(
        scale_shift_relu_kernel,
        grid=(n_tiles,),
        in_specs=[
            pl.BlockSpec((tm, C_pad), lambda i: (i, 0)),
            pl.BlockSpec((1, C_pad), lambda i: (0, 0)),
            pl.BlockSpec((1, C_pad), lambda i: (0, 0)),
        ],
        out_specs=pl.BlockSpec((tm, C_pad), lambda i: (i, 0)),
        out_shape=jax.ShapeDtypeStruct((M_pad, C_pad), jnp.float32),
        compiler_params=pltpu.CompilerParams(
            dimension_semantics=("parallel",),
            vmem_limit_bytes=VMEM_LIMIT_BYTES),
        cost_estimate=pl.CostEstimate(
            flops=3 * M_pad * C_pad,
            transcendentals=0,
            bytes_accessed=M_pad * C_pad * 2 + M_pad * C_pad * 4 + 2 * C_pad * 4),
    )(y, scale, shift)

    out = out[:M, :Cout].reshape(N, H, W, Cout)
    return jnp.transpose(out, (0, 3, 1, 2))            # back to NCHW


# ---------------------------------------------------------------------------
# Pure-JAX reference (for correctness checks only)
# ---------------------------------------------------------------------------
def reference_forward(x_nchw, w_oihw, gamma, beta, conv_dtype=jnp.float32):
    x = jnp.transpose(x_nchw, (0, 2, 3, 1)).astype(jnp.float32)
    w = jnp.transpose(w_oihw, (2, 3, 1, 0))            # HWIO
    y = jax.lax.conv_general_dilated(
        x.astype(conv_dtype), w.astype(conv_dtype),
        window_strides=(1, 1), padding="SAME",
        dimension_numbers=("NHWC", "HWIO", "NHWC"),
        preferred_element_type=jnp.float32)
    mean = jnp.mean(y, axis=(0, 1, 2), keepdims=True)
    var = jnp.mean((y - mean) ** 2, axis=(0, 1, 2), keepdims=True)
    y = (y - mean) * jax.lax.rsqrt(var + BN_EPS) * gamma + beta
    y = jnp.maximum(y, 0.0)
    return jnp.transpose(y, (0, 3, 1, 2))


# ---------------------------------------------------------------------------
if __name__ == "__main__":
    key = jax.random.PRNGKey(0)
    kx, kw = jax.random.split(key)

    N, Cin, H, W = 2, 4, 16, 16
    Cout = 4
    x = jax.random.normal(kx, (N, Cin, H, W), jnp.float32)
    # PyTorch kaiming_normal_(a=1): std = sqrt(2 / (1 + 1^2) / fan_in)
    fan_in = Cin * 9
    w_conv = jax.random.normal(kw, (Cout, Cin, 3, 3), jnp.float32) * (1.0 / fan_in) ** 0.5
    gamma = jnp.ones((Cout,), jnp.float32)   # BatchNorm2d default init
    beta = jnp.zeros((Cout,), jnp.float32)

    # tm=128 -> 4 row tiles at this toy size, exercising the cross-tile BN
    # reduction; at realistic sizes use the default tm=512 (or larger).
    fwd = jax.jit(functools.partial(conv_bn_relu_forward, tm=128))
    out = jax.block_until_ready(fwd(x, w_conv, gamma, beta))

    assert out.shape == (N, Cout, H, W)

    # Check vs a reference using the same bf16-rounded conv operands
    # (f32 accumulation; tolerance covers the bf16 intermediate store), and a
    # looser check vs the full-f32 reference.
    ref_bf16 = reference_forward(x, w_conv, gamma, beta, conv_dtype=jnp.bfloat16)
    ref_f32 = reference_forward(x, w_conv, gamma, beta, conv_dtype=jnp.float32)
    assert jnp.allclose(out, ref_bf16, atol=2e-2, rtol=2e-2), "mismatch vs bf16-matched reference"
    assert jnp.allclose(out, ref_f32, atol=5e-2, rtol=5e-2), "mismatch vs f32 reference"

    print("KERNEL_OK")
</pallas_src>

<mosaic_0001>
module attributes {stable_mosaic.version = 11 : i64} {
  func.func @scale_shift_relu_kernel(%arg0: i32, %arg1: memref<128x128xbf16, #tpu.memory_space<vmem>>, %arg2: memref<1x128xf32, #tpu.memory_space<vmem>>, %arg3: memref<1x128xf32, #tpu.memory_space<vmem>>, %arg4: memref<128x128xf32, #tpu.memory_space<vmem>>) attributes {dimension_semantics = [#tpu.dimension_semantics<parallel>], iteration_bounds = array<i64: 4>, scalar_prefetch = 0 : i64, scratch_operands = 0 : i64, tpu.core_type = #tpu.core_type<tc>, window_params = [{transform_indices = @transform_0, window_bounds = array<i64: 128, 128>}, {pipeline_mode = #tpu.pipeline_mode<synchronous>, transform_indices = @transform_1, window_bounds = array<i64: 1, 128>}, {pipeline_mode = #tpu.pipeline_mode<synchronous>, transform_indices = @transform_2, window_bounds = array<i64: 1, 128>}, {transform_indices = @transform_3, window_bounds = array<i64: 128, 128>}]} {
    %c0 = arith.constant 0 : index
    %c0_0 = arith.constant 0 : index
    %0 = vector.load %arg1[%c0, %c0_0] : memref<128x128xbf16, #tpu.memory_space<vmem>>, vector<128x128xbf16>
    %1 = arith.extf %0 : vector<128x128xbf16> to vector<128x128xf32>
    %c0_1 = arith.constant 0 : index
    %c0_2 = arith.constant 0 : index
    %2 = vector.load %arg2[%c0_1, %c0_2] : memref<1x128xf32, #tpu.memory_space<vmem>>, vector<1x128xf32>
    %3 = vector.broadcast %2 : vector<1x128xf32> to vector<128x128xf32>
    %4 = arith.mulf %1, %3 : vector<128x128xf32>
    %c0_3 = arith.constant 0 : index
    %c0_4 = arith.constant 0 : index
    %5 = vector.load %arg3[%c0_3, %c0_4] : memref<1x128xf32, #tpu.memory_space<vmem>>, vector<1x128xf32>
    %6 = vector.broadcast %5 : vector<1x128xf32> to vector<128x128xf32>
    %7 = arith.addf %4, %6 : vector<128x128xf32>
    %cst = arith.constant 0.000000e+00 : f32
    %8 = vector.broadcast %cst : f32 to vector<128x128xf32>
    %9 = arith.maximumf %7, %8 : vector<128x128xf32>
    %c0_5 = arith.constant 0 : index
    %c0_6 = arith.constant 0 : index
    %10 = vector.load %arg4[%c0_5, %c0_6] : memref<128x128xf32, #tpu.memory_space<vmem>>, vector<128x128xf32>
    tpu.vector_store %arg4[%c0_5, %c0_6], %9 {strides = array<i32>} : memref<128x128xf32, #tpu.memory_space<vmem>>, vector<128x128xf32>,
    return
  }
  func.func @transform_0(%arg0: i32) -> (i32, i32) {
    %c0_i32 = arith.constant 0 : i32
    %c0_i32_0 = arith.constant 0 : i32
    return %arg0, %c0_i32 : i32, i32
  }
  func.func @transform_1(%arg0: i32) -> (i32, i32) {
    %c0_i32 = arith.constant 0 : i32
    %c0_i32_0 = arith.constant 0 : i32
    %c0_i32_1 = arith.constant 0 : i32
    return %c0_i32, %c0_i32_0 : i32, i32
  }
  func.func @transform_2(%arg0: i32) -> (i32, i32) {
    %c0_i32 = arith.constant 0 : i32
    %c0_i32_0 = arith.constant 0 : i32
    %c0_i32_1 = arith.constant 0 : i32
    return %c0_i32, %c0_i32_0 : i32, i32
  }
  func.func @transform_3(%arg0: i32) -> (i32, i32) {
    %c0_i32 = arith.constant 0 : i32
    %c0_i32_0 = arith.constant 0 : i32
    return %arg0, %c0_i32 : i32, i32
  }
}

module attributes {stable_mosaic.version = 11 : i64} {
  func.func @matmul_stats_kernel(%arg0: i32, %arg1: memref<128x128xbf16, #tpu.memory_space<vmem>>, %arg2: memref<128x128xbf16, #tpu.memory_space<vmem>>, %arg3: memref<128x128xbf16, #tpu.memory_space<vmem>>, %arg4: memref<1x1x128xf32, #tpu.memory_space<vmem>>, %arg5: memref<1x1x128xf32, #tpu.memory_space<vmem>>) attributes {dimension_semantics = [#tpu.dimension_semantics<parallel>], iteration_bounds = array<i64: 4>, scalar_prefetch = 0 : i64, scratch_operands = 0 : i64, tpu.core_type = #tpu.core_type<tc>, window_params = [{transform_indices = @transform_0, window_bounds = array<i64: 128, 128>}, {pipeline_mode = #tpu.pipeline_mode<synchronous>, transform_indices = @transform_1, window_bounds = array<i64: 128, 128>}, {transform_indices = @transform_2, window_bounds = array<i64: 128, 128>}, {transform_indices = @transform_3, window_bounds = array<i64: 1, 1, 128>}, {transform_indices = @transform_4, window_bounds = array<i64: 1, 1, 128>}]} {
    %c0 = arith.constant 0 : index
    %c0_0 = arith.constant 0 : index
    %0 = vector.load %arg1[%c0, %c0_0] : memref<128x128xbf16, #tpu.memory_space<vmem>>, vector<128x128xbf16>
    %c0_1 = arith.constant 0 : index
    %c0_2 = arith.constant 0 : index
    %1 = vector.load %arg2[%c0_1, %c0_2] : memref<128x128xbf16, #tpu.memory_space<vmem>>, vector<128x128xbf16>
    %cst = arith.constant dense<0.000000e+00> : vector<128x128xf32>
    %2 = tpu.matmul %0, %1, %cst {dimension_numbers = #tpu.dot_dimension_numbers<[1], [0], [0], [1], [0, 0, 1, 1], [], []>} : vector<128x128xbf16>, vector<128x128xbf16>, vector<128x128xf32> -> vector<128x128xf32>
    %cst_3 = arith.constant dense<0.000000e+00> : vector<128xf32>
    %3 = vector.multi_reduction <add>, %2, %cst_3 [0] : vector<128x128xf32> to vector<128xf32>
    %4 = vector.shape_cast %3 : vector<128xf32> to vector<1x128xf32>
    %5 = vector.shape_cast %4 : vector<1x128xf32> to vector<1x1x128xf32>
    %c0_4 = arith.constant 0 : index
    %c0_5 = arith.constant 0 : index
    %c0_6 = arith.constant 0 : index
    %6 = vector.load %arg4[%c0_4, %c0_5, %c0_6] : memref<1x1x128xf32, #tpu.memory_space<vmem>>, vector<1x1x128xf32>
    tpu.vector_store %arg4[%c0_4, %c0_5, %c0_6], %5 {strides = array<i32>} : memref<1x1x128xf32, #tpu.memory_space<vmem>>, vector<1x1x128xf32>,
    %7 = arith.mulf %2, %2 : vector<128x128xf32>
    %cst_7 = arith.constant dense<0.000000e+00> : vector<128xf32>
    %8 = vector.multi_reduction <add>, %7, %cst_7 [0] : vector<128x128xf32> to vector<128xf32>
    %9 = vector.shape_cast %8 : vector<128xf32> to vector<1x128xf32>
    %10 = vector.shape_cast %9 : vector<1x128xf32> to vector<1x1x128xf32>
    %c0_8 = arith.constant 0 : index
    %c0_9 = arith.constant 0 : index
    %c0_10 = arith.constant 0 : index
    %11 = vector.load %arg5[%c0_8, %c0_9, %c0_10] : memref<1x1x128xf32, #tpu.memory_space<vmem>>, vector<1x1x128xf32>
    tpu.vector_store %arg5[%c0_8, %c0_9, %c0_10], %10 {strides = array<i32>} : memref<1x1x128xf32, #tpu.memory_space<vmem>>, vector<1x1x128xf32>,
    %12 = arith.truncf %2 : vector<128x128xf32> to vector<128x128xbf16>
    %c0_11 = arith.constant 0 : index
    %c0_12 = arith.constant 0 : index
    %13 = vector.load %arg3[%c0_11, %c0_12] : memref<128x128xbf16, #tpu.memory_space<vmem>>, vector<128x128xbf16>
    tpu.vector_store %arg3[%c0_11, %c0_12], %12 {strides = array<i32>} : memref<128x128xbf16, #tpu.memory_space<vmem>>, vector<128x128xbf16>,
    return
  }
  func.func @transform_0(%arg0: i32) -> (i32, i32) {
    %c0_i32 = arith.constant 0 : i32
    %c0_i32_0 = arith.constant 0 : i32
    return %arg0, %c0_i32 : i32, i32
  }
  func.func @transform_1(%arg0: i32) -> (i32, i32) {
    %c0_i32 = arith.constant 0 : i32
    %c0_i32_0 = arith.constant 0 : i32
    %c0_i32_1 = arith.constant 0 : i32
    return %c0_i32, %c0_i32_0 : i32, i32
  }
  func.func @transform_2(%arg0: i32) -> (i32, i32) {
    %c0_i32 = arith.constant 0 : i32
    %c0_i32_0 = arith.constant 0 : i32
    return %arg0, %c0_i32 : i32, i32
  }
  func.func @transform_3(%arg0: i32) -> (i32, i32, i32) {
    %c0_i32 = arith.constant 0 : i32
    %c0_i32_0 = arith.constant 0 : i32
    %c0_i32_1 = arith.constant 0 : i32
    return %arg0, %c0_i32, %c0_i32_0 : i32, i32, i32
  }
  func.func @transform_4(%arg0: i32) -> (i32, i32, i32) {
    %c0_i32 = arith.constant 0 : i32
    %c0_i32_0 = arith.constant 0 : i32
    %c0_i32_1 = arith.constant 0 : i32
    return %arg0, %c0_i32, %c0_i32_0 : i32, i32, i32
  }
}

</mosaic_0001>

<llo_original>
// kernel: conv_bn_relu_forward.3
$region0: #{conv_bn_relu_forward.3}
  #allocation0 [shape = 'u32[]', space=smem, size = 0x4, offset = 0x4, fixed_abs, tag = 'smem constant byte address 0x4 - core index']
  #allocation1 [shape = 'u32[144,128]{1,0:T(1,128)}', space=vmem, size = 0x12000, scoped, tag = 'internal scratch']
  %s0 = inlined_call_operand.vmem [shape: bf16[512,128], index: 0, kind: input, shape index: {}]
  %s1 = inlined_call_operand.vmem [shape: f32[1,128], index: 1, kind: input, shape index: {}]
  %s2 = inlined_call_operand.vmem [shape: f32[1,128], index: 2, kind: input, shape index: {}]
  %s3 = inlined_call_operand.vmem [shape: f32[512,128], index: 3, kind: output, shape index: {}]
  %s4 = sld [smem:[#allocation0]]
  $region45: #{conv_bn_relu_forward.3} parent=0
    _
  %s6 = ssub.s32 1, %s4
  %s7 = scalar_select 0, %s6, %s4
  loop: start=0, step=1, limit=6
  $region2: #{conv_bn_relu_forward.3} parent=0 // loop_pre_header
    _
  $region3: #{conv_bn_relu_forward.3} parent=0 // loop_header
    %s9 = sphi 0, %s13
    %p10 = scmp.ge.s32.totalorder %s9, 6
    %s19 = sphi 0, %s21
    %s22 = sphi 0, %s19
    %s23 = sphi 0, %s22
    %s39 = sphi 0, %s23
    %s43 = sphi 0, %s43
    %s45 = sphi 0, %s43
    %s46 = sphi 0, %s45
    %s60 = sphi 0, %s46
    %s64 = sphi 0, %s64
    %s66 = sphi 0, %s64
    %s67 = sphi 0, %s66
    %s81 = sphi 0, %s67
    %s87 = sphi 0, %s89
    %s90 = sphi 0, %s87
    %s91 = sphi 0, %s90
    %s107 = sphi 0, %s91
  $region4: #{conv_bn_relu_forward.3} parent=0 // loop_header_branch
    %12 = sbr.rel (%p10) target = $region8
  $region5: #{conv_bn_relu_forward.3} parent=0 // loop_body
    %s14 = ssub.s32 %s9, 1
    %s15 = ssub.s32 %s9, 2
    %s16 = sadd.s32 %s9, 1
    %s17 = ssub.s32 %s9, %s16
    %p18 = scmp.eq.s32.totalorder %s17, 0
    %s20 = sadd.s32 %s19, 1
    %s21 = scalar_select %p18, %s19, %s20
    %p24 = pneg %p18
    %p25 = scmp.eq.s32.totalorder %s9, 3
    %p26 = por %p24, %p25
    %p27 = scmp.ne.s32.totalorder %s19, %s22
    %p28 = scmp.eq.s32.totalorder %s9, 0
    %p29 = por %p27, %p28
    %p30 = scmp.ne.s32.totalorder %s19, %s22
    %p31 = scmp.eq.s32.totalorder %s14, 3
    %p32 = por %p30, %p31
    %p33 = scmp.ne.s32.totalorder %s22, %s23
    %p34 = scmp.eq.s32.totalorder %s14, 0
    %p35 = por %p33, %p34
    %p36 = scmp.ne.s32.totalorder %s22, %s23
    %p37 = scmp.eq.s32.totalorder %s15, 3
    %p38 = por %p36, %p37
    %p40 = scmp.ne.s32.totalorder %s23, %s39
    %p41 = scmp.eq.s32.totalorder %s15, 0
    %p42 = por %p40, %p41
    %s44 = sadd.s32 %s43, 1
    %p47 = scmp.eq.s32.totalorder %s9, 3
    %p48 = scmp.ne.s32.totalorder %s43, %s45
    %p49 = scmp.eq.s32.totalorder %s9, 0
    %p50 = por %p48, %p49
    %p51 = scmp.ne.s32.totalorder %s43, %s45
    %p52 = scmp.eq.s32.totalorder %s14, 3
    %p53 = por %p51, %p52
    %p54 = scmp.ne.s32.totalorder %s45, %s46
    %p55 = scmp.eq.s32.totalorder %s14, 0
    %p56 = por %p54, %p55
    %p57 = scmp.ne.s32.totalorder %s45, %s46
    %p58 = scmp.eq.s32.totalorder %s15, 3
    %p59 = por %p57, %p58
    %p61 = scmp.ne.s32.totalorder %s46, %s60
    %p62 = scmp.eq.s32.totalorder %s15, 0
    %p63 = por %p61, %p62
    %s65 = sadd.s32 %s64, 1
    %p68 = scmp.eq.s32.totalorder %s9, 3
    %p69 = scmp.ne.s32.totalorder %s64, %s66
    %p70 = scmp.eq.s32.totalorder %s9, 0
    %p71 = por %p69, %p70
    %p72 = scmp.ne.s32.totalorder %s64, %s66
    %p73 = scmp.eq.s32.totalorder %s14, 3
    %p74 = por %p72, %p73
    %p75 = scmp.ne.s32.totalorder %s66, %s67
    %p76 = scmp.eq.s32.totalorder %s14, 0
    %p77 = por %p75, %p76
    %p78 = scmp.ne.s32.totalorder %s66, %s67
    %p79 = scmp.eq.s32.totalorder %s15, 3
    %p80 = por %p78, %p79
    %p82 = scmp.ne.s32.totalorder %s67, %s81
    %p83 = scmp.eq.s32.totalorder %s15, 0
    %p84 = por %p82, %p83
    %s85 = ssub.s32 %s9, %s16
    %p86 = scmp.eq.s32.totalorder %s85, 0
    %s88 = sadd.s32 %s87, 1
    %s89 = scalar_select %p86, %s87, %s88
    %p92 = pneg %p86
    %p93 = scmp.eq.s32.totalorder %s9, 3
    %p94 = por %p92, %p93
    %p95 = scmp.ne.s32.totalorder %s87, %s90
    %p96 = scmp.eq.s32.totalorder %s9, 0
    %p97 = por %p95, %p96
    %p98 = scmp.ne.s32.totalorder %s87, %s90
    %p99 = scmp.eq.s32.totalorder %s14, 3
    %p100 = por %p98, %p99
    %p101 = scmp.ne.s32.totalorder %s90, %s91
    %p102 = scmp.eq.s32.totalorder %s14, 0
    %p103 = por %p101, %p102
    %p104 = scmp.ne.s32.totalorder %s90, %s91
    %p105 = scmp.eq.s32.totalorder %s15, 3
    %p106 = por %p104, %p105
    %p108 = scmp.ne.s32.totalorder %s91, %s107
    %p109 = scmp.eq.s32.totalorder %s15, 0
    %p110 = por %p108, %p109
    %p111 = scmp.le.s32.totalorder 1, %s9
    %p112 = scmp.lt.s32.totalorder %s9, 5
    %p113 = pnand %p111, %p112
    %p114 = pneg %p113
    // Predicated region
    $region9: #{conv_bn_relu_forward.3} parent=5 // pred_check
      _
    $region10: #{conv_bn_relu_forward.3} parent=5 // pred_check_branch
      %116 = sbr.rel (%p113) target = $region12
    $region11: #{conv_bn_relu_forward.3} parent=5 // pred_region
      %s117 = ssub.s32 %s9, 1
      // Predicated region
      $region13: #{conv_bn_relu_forward.3} parent=11 // pred_check
        %p118 = pneg %p56
      $region14: #{conv_bn_relu_forward.3} parent=11 // pred_check_branch
        %120 = sbr.rel (%p118) target = $region16
      $region15: #{conv_bn_relu_forward.3} parent=11 // pred_region
        _
      $region16: #{conv_bn_relu_forward.3} parent=11 // pred_fallthru
        _
      // Predicated region
      $region17: #{conv_bn_relu_forward.3} parent=11 // pred_check
        %p121 = pneg %p77
      $region18: #{conv_bn_relu_forward.3} parent=11 // pred_check_branch
        %123 = sbr.rel (%p121) target = $region20
      $region19: #{conv_bn_relu_forward.3} parent=11 // pred_region
        _
      $region20: #{conv_bn_relu_forward.3} parent=11 // pred_fallthru
        _
    $region12: #{conv_bn_relu_forward.3} parent=5 // pred_fallthru
      _
    %p124 = scmp.lt.s32.totalorder %s9, 4
    // Predicated region
    $region21: #{conv_bn_relu_forward.3} parent=5 // pred_check
      %p125 = pneg %p124
    $region22: #{conv_bn_relu_forward.3} parent=5 // pred_check_branch
      %127 = sbr.rel (%p125) target = $region24
    $region23: #{conv_bn_relu_forward.3} parent=5 // pred_region
      // Predicated region
      $region25: #{conv_bn_relu_forward.3} parent=23 // pred_check
        %p128 = pneg %p29
      $region26: #{conv_bn_relu_forward.3} parent=23 // pred_check_branch
        %130 = sbr.rel (%p128) target = $region28
      $region27: #{conv_bn_relu_forward.3} parent=23 // pred_region
        %s131 = smul.u32 16, %s9
        %p132 = scmp.lt.s32.totalorder %s131, 63
        %s133 = scalar_select %p132, %s131, 63
        %s134 = smul.addr %s133, 4
        %s135 = scalar_lea.vmem %s0, %s134
        %s136 = smul.u32 16, %s9
      $region28: #{conv_bn_relu_forward.3} parent=23 // pred_fallthru
        _
    $region24: #{conv_bn_relu_forward.3} parent=5 // pred_fallthru
      _
    %p137 = scmp.le.s32.totalorder 1, %s9
    %p138 = scmp.lt.s32.totalorder %s9, 5
    %p139 = pnand %p137, %p138
    %p140 = pneg %p139
    // Predicated region
    $region29: #{conv_bn_relu_forward.3} parent=5 // pred_check
      _
    $region30: #{conv_bn_relu_forward.3} parent=5 // pred_check_branch
      %142 = sbr.rel (%p139) target = $region32
    $region31: #{conv_bn_relu_forward.3} parent=5 // pred_region
      %s143 = ssub.s32 %s9, 1
      %s144 = smul.u32 16, %s14
      %p145 = scmp.lt.s32.totalorder %s144, 63
      %s146 = scalar_select %p145, %s144, 63
      %s147 = smul.addr %s146, 4
      %s148 = scalar_lea.vmem %s0, %s147
      %p149 = pneg %p35
      %p150 = pneg %p32
      %p151 = pneg %p56
      %p152 = pneg %p53
      %p153 = pneg %p77
      %p154 = pneg %p74
      %p155 = pneg %p103
      %p156 = pneg %p100
      %s157 = smul.u32 16, %s14
      %p158 = scmp.lt.s32.totalorder %s157, 63
      %s159 = scalar_select %p158, %s157, 63
      %s160 = smul.addr %s159, 8
      %s161 = scalar_lea.vmem %s3, %s160
      %s162 = smul.u32 16, %s14
      %p163 = scmp.lt.s32.totalorder %s162, 63
      %s164 = scalar_select %p163, %s162, 63
      %s165 = smul.addr %s164, 4
      %s166 = scalar_lea.vmem %s0, %s165
      %s167 = smul.u32 16, %s14
      %s168 = smul.u32 16, %s14
      %p169 = scmp.lt.s32.totalorder %s168, 63
      %s170 = scalar_select %p169, %s168, 63
      %s171 = smul.addr %s170, 8
      %s172 = scalar_lea.vmem %s3, %s171
      %s173 = smul.u32 16, %s14
      %v174 = vld [vmem:[%s166] sm:$0xf]
      %v175 = vld [vmem:[%s166 + $0x4] sm:$0xf]
      %v176 = vld [vmem:[%s166 + $0x8] sm:$0xf]
      %v177 = vld [vmem:[%s166 + $0xc] sm:$0xf]
      %v178 = vld [vmem:[%s166 + $0x10] sm:$0xf]
      %v179 = vld [vmem:[%s166 + $0x14] sm:$0xf]
      %v180 = vld [vmem:[%s166 + $0x18] sm:$0xf]
      %v181 = vld [vmem:[%s166 + $0x1c] sm:$0xf]
      %v182 = vld [vmem:[%s166 + $0x20] sm:$0xf]
      %v183 = vld [vmem:[%s166 + $0x24] sm:$0xf]
      %v184 = vld [vmem:[%s166 + $0x28] sm:$0xf]
      %v185 = vld [vmem:[%s166 + $0x2c] sm:$0xf]
      %v186 = vld [vmem:[%s166 + $0x30] sm:$0xf]
      %v187 = vld [vmem:[%s166 + $0x34] sm:$0xf]
      %v188 = vld [vmem:[%s166 + $0x38] sm:$0xf]
      %v189 = vld [vmem:[%s166 + $0x3c] sm:$0xf]
      %v190 = vunpack.c.l.bf16 %v174
      %v191 = vunpack.c.l.bf16 %v175
      %v192 = vunpack.c.l.bf16 %v176
      %v193 = vunpack.c.l.bf16 %v177
      %v194 = vunpack.c.l.bf16 %v178
      %v195 = vunpack.c.l.bf16 %v179
      %v196 = vunpack.c.l.bf16 %v180
      %v197 = vunpack.c.l.bf16 %v181
      %v198 = vunpack.c.l.bf16 %v182
      %v199 = vunpack.c.l.bf16 %v183
      %v200 = vunpack.c.l.bf16 %v184
      %v201 = vunpack.c.l.bf16 %v185
      %v202 = vunpack.c.l.bf16 %v186
      %v203 = vunpack.c.l.bf16 %v187
      %v204 = vunpack.c.l.bf16 %v188
      %v205 = vunpack.c.l.bf16 %v189
      %v206 = vld [vmem:[%s1] sm:$0x1]
      %v208 = vlaneseq
      %v209 = vshrl.u32 %v208, 7
      %v210 = vsub.s32 0, %v209
      %v211 = vrot.slane %v206, %v210
      %v213 = vmul.f32 %v190, %v211
      %v214 = vmul.f32 %v191, %v211
      %v215 = vmul.f32 %v192, %v211
      %v216 = vmul.f32 %v193, %v211
      %v217 = vmul.f32 %v194, %v211
      %v218 = vmul.f32 %v195, %v211
      %v219 = vmul.f32 %v196, %v211
      %v220 = vmul.f32 %v197, %v211
      %v221 = vmul.f32 %v198, %v211
      %v222 = vmul.f32 %v199, %v211
      %v223 = vmul.f32 %v200, %v211
      %v224 = vmul.f32 %v201, %v211
      %v225 = vmul.f32 %v202, %v211
      %v226 = vmul.f32 %v203, %v211
      %v227 = vmul.f32 %v204, %v211
      %v228 = vmul.f32 %v205, %v211
      %v229 = vld [vmem:[%s2] sm:$0x1]
      %v231 = vlaneseq
      %v232 = vshrl.u32 %v231, 7
      %v233 = vsub.s32 0, %v232
      %v234 = vrot.slane %v229, %v233
      %v236 = vadd.f32 %v213, %v234
      %v237 = vadd.f32 %v214, %v234
      %v238 = vadd.f32 %v215, %v234
      %v239 = vadd.f32 %v216, %v234
      %v240 = vadd.f32 %v217, %v234
      %v241 = vadd.f32 %v218, %v234
      %v242 = vadd.f32 %v219, %v234
      %v243 = vadd.f32 %v220, %v234
      %v244 = vadd.f32 %v221, %v234
      %v245 = vadd.f32 %v222, %v234
      %v246 = vadd.f32 %v223, %v234
      %v247 = vadd.f32 %v224, %v234
      %v248 = vadd.f32 %v225, %v234
      %v249 = vadd.f32 %v226, %v234
      %v250 = vadd.f32 %v227, %v234
      %v251 = vadd.f32 %v228, %v234
      %v252 = vmax.f32 %v236, 0.0
      %v253 = vmax.f32 %v237, 0.0
      %v254 = vmax.f32 %v238, 0.0
      %v255 = vmax.f32 %v239, 0.0
      %v256 = vmax.f32 %v240, 0.0
      %v257 = vmax.f32 %v241, 0.0
      %v258 = vmax.f32 %v242, 0.0
      %v259 = vmax.f32 %v243, 0.0
      %v260 = vmax.f32 %v244, 0.0
      %v261 = vmax.f32 %v245, 0.0
      %v262 = vmax.f32 %v246, 0.0
      %v263 = vmax.f32 %v247, 0.0
      %v264 = vmax.f32 %v248, 0.0
      %v265 = vmax.f32 %v249, 0.0
      %v266 = vmax.f32 %v250, 0.0
      %v267 = vmax.f32 %v251, 0.0
      %268 = vst [vmem:[%s172] sm:$0xff] %v252
      %269 = vst [vmem:[%s172 + $0x8] sm:$0xff] %v253
      %270 = vst [vmem:[%s172 + $0x10] sm:$0xff] %v254
      %271 = vst [vmem:[%s172 + $0x18] sm:$0xff] %v255
      %272 = vst [vmem:[%s172 + $0x20] sm:$0xff] %v256
      %273 = vst [vmem:[%s172 + $0x28] sm:$0xff] %v257
      %274 = vst [vmem:[%s172 + $0x30] sm:$0xff] %v258
      %275 = vst [vmem:[%s172 + $0x38] sm:$0xff] %v259
      %276 = vst [vmem:[%s172 + $0x40] sm:$0xff] %v260
      %277 = vst [vmem:[%s172 + $0x48] sm:$0xff] %v261
      %278 = vst [vmem:[%s172 + $0x50] sm:$0xff] %v262
      %279 = vst [vmem:[%s172 + $0x58] sm:$0xff] %v263
      %280 = vst [vmem:[%s172 + $0x60] sm:$0xff] %v264
      %281 = vst [vmem:[%s172 + $0x68] sm:$0xff] %v265
      %282 = vst [vmem:[%s172 + $0x70] sm:$0xff] %v266
      %283 = vst [vmem:[%s172 + $0x78] sm:$0xff] %v267
      %s284 = smul.u32 16, %s14
      %p285 = scmp.lt.s32.totalorder %s284, 63
      %s286 = scalar_select %p285, %s284, 63
      %s287 = smul.addr %s286, 8
      %s288 = scalar_lea.vmem %s3, %s287
      // Predicated region
      $region33: #{conv_bn_relu_forward.3} parent=31 // pred_check
        %p289 = pneg %p100
      $region34: #{conv_bn_relu_forward.3} parent=31 // pred_check_branch
        %291 = sbr.rel (%p289) target = $region36
      $region35: #{conv_bn_relu_forward.3} parent=31 // pred_region
        %s292 = smul.u32 16, %s14
      $region36: #{conv_bn_relu_forward.3} parent=31 // pred_fallthru
        _
    $region32: #{conv_bn_relu_forward.3} parent=5 // pred_fallthru
      _
    %p293 = scmp.le.s32.totalorder 2, %s9
    // Predicated region
    $region37: #{conv_bn_relu_forward.3} parent=5 // pred_check
      %p294 = pneg %p293
    $region38: #{conv_bn_relu_forward.3} parent=5 // pred_check_branch
      %296 = sbr.rel (%p294) target = $region40
    $region39: #{conv_bn_relu_forward.3} parent=5 // pred_region
      %s297 = ssub.s32 %s9, 2
      // Predicated region
      $region41: #{conv_bn_relu_forward.3} parent=39 // pred_check
        %p298 = pneg %p106
      $region42: #{conv_bn_relu_forward.3} parent=39 // pred_check_branch
        %300 = sbr.rel (%p298) target = $region44
      $region43: #{conv_bn_relu_forward.3} parent=39 // pred_region
        %s301 = smul.u32 16, %s15
        %p302 = scmp.lt.s32.totalorder %s301, 63
        %s303 = scalar_select %p302, %s301, 63
        %s304 = smul.addr %s303, 8
        %s305 = scalar_lea.vmem %s3, %s304
      $region44: #{conv_bn_relu_forward.3} parent=39 // pred_fallthru
        _
    $region40: #{conv_bn_relu_forward.3} parent=5 // pred_fallthru
      _
  $region6: #{conv_bn_relu_forward.3} parent=0 // loop_footer
    %s13 = sadd.s32 1, %s9
  $region7: #{conv_bn_relu_forward.3} parent=0 // loop_footer_branch
    %8 = sbr.rel target = $region3
  $region8: #{conv_bn_relu_forward.3} parent=0 // loop_exit
    _

// kernel: conv_bn_relu_forward.2
$region0: #{conv_bn_relu_forward.2}
  #allocation0 [shape = 'u32[]', space=smem, size = 0x4, offset = 0x4, fixed_abs, tag = 'smem constant byte address 0x4 - core index']
  #allocation1 [shape = 'u32[144,128]{1,0:T(1,128)}', space=vmem, size = 0x12000, scoped, tag = 'internal scratch']
  %s0 = inlined_call_operand.vmem [shape: bf16[512,128], index: 0, kind: input, shape index: {}]
  %s1 = inlined_call_operand.vmem [shape: bf16[128,128], index: 1, kind: input, shape index: {}]
  %s2 = inlined_call_operand.vmem [shape: bf16[512,128], index: 2, kind: output, shape index: {0}]
  %s3 = inlined_call_operand.vmem [shape: f32[4,1,128], index: 3, kind: output, shape index: {1}]
  %s4 = inlined_call_operand.vmem [shape: f32[4,1,128], index: 4, kind: output, shape index: {2}]
  %5 = xla_tuple %s2, %s3, %s4
  %s6 = sld [smem:[#allocation0]]
  $region57: #{conv_bn_relu_forward.2} parent=0
    _
  %s8 = ssub.s32 1, %s6
  %s9 = scalar_select 0, %s8, %s6
  loop: start=0, step=1, limit=6
  $region2: #{conv_bn_relu_forward.2} parent=0 // loop_pre_header
    _
  $region3: #{conv_bn_relu_forward.2} parent=0 // loop_header
    %s11 = sphi 0, %s15
    %p12 = scmp.ge.s32.totalorder %s11, 6
    %s21 = sphi 0, %s23
    %s24 = sphi 0, %s21
    %s25 = sphi 0, %s24
    %s41 = sphi 0, %s25
    %s45 = sphi 0, %s45
    %s47 = sphi 0, %s45
    %s48 = sphi 0, %s47
    %s62 = sphi 0, %s48
    %s68 = sphi 0, %s70
    %s71 = sphi 0, %s68
    %s72 = sphi 0, %s71
    %s88 = sphi 0, %s72
    %s94 = sphi 0, %s96
    %s97 = sphi 0, %s94
    %s98 = sphi 0, %s97
    %s114 = sphi 0, %s98
    %s120 = sphi 0, %s122
    %s123 = sphi 0, %s120
    %s124 = sphi 0, %s123
    %s140 = sphi 0, %s124
  $region4: #{conv_bn_relu_forward.2} parent=0 // loop_header_branch
    %14 = sbr.rel (%p12) target = $region8
  $region5: #{conv_bn_relu_forward.2} parent=0 // loop_body
    %s16 = ssub.s32 %s11, 1
    %s17 = ssub.s32 %s11, 2
    %s18 = sadd.s32 %s11, 1
    %s19 = ssub.s32 %s11, %s18
    %p20 = scmp.eq.s32.totalorder %s19, 0
    %s22 = sadd.s32 %s21, 1
    %s23 = scalar_select %p20, %s21, %s22
    %p26 = pneg %p20
    %p27 = scmp.eq.s32.totalorder %s11, 3
    %p28 = por %p26, %p27
    %p29 = scmp.ne.s32.totalorder %s21, %s24
    %p30 = scmp.eq.s32.totalorder %s11, 0
    %p31 = por %p29, %p30
    %p32 = scmp.ne.s32.totalorder %s21, %s24
    %p33 = scmp.eq.s32.totalorder %s16, 3
    %p34 = por %p32, %p33
    %p35 = scmp.ne.s32.totalorder %s24, %s25
    %p36 = scmp.eq.s32.totalorder %s16, 0
    %p37 = por %p35, %p36
    %p38 = scmp.ne.s32.totalorder %s24, %s25
    %p39 = scmp.eq.s32.totalorder %s17, 3
    %p40 = por %p38, %p39
    %p42 = scmp.ne.s32.totalorder %s25, %s41
    %p43 = scmp.eq.s32.totalorder %s17, 0
    %p44 = por %p42, %p43
    %s46 = sadd.s32 %s45, 1
    %p49 = scmp.eq.s32.totalorder %s11, 3
    %p50 = scmp.ne.s32.totalorder %s45, %s47
    %p51 = scmp.eq.s32.totalorder %s11, 0
    %p52 = por %p50, %p51
    %p53 = scmp.ne.s32.totalorder %s45, %s47
    %p54 = scmp.eq.s32.totalorder %s16, 3
    %p55 = por %p53, %p54
    %p56 = scmp.ne.s32.totalorder %s47, %s48
    %p57 = scmp.eq.s32.totalorder %s16, 0
    %p58 = por %p56, %p57
    %p59 = scmp.ne.s32.totalorder %s47, %s48
    %p60 = scmp.eq.s32.totalorder %s17, 3
    %p61 = por %p59, %p60
    %p63 = scmp.ne.s32.totalorder %s48, %s62
    %p64 = scmp.eq.s32.totalorder %s17, 0
    %p65 = por %p63, %p64
    %s66 = ssub.s32 %s11, %s18
    %p67 = scmp.eq.s32.totalorder %s66, 0
    %s69 = sadd.s32 %s68, 1
    %s70 = scalar_select %p67, %s68, %s69
    %p73 = pneg %p67
    %p74 = scmp.eq.s32.totalorder %s11, 3
    %p75 = por %p73, %p74
    %p76 = scmp.ne.s32.totalorder %s68, %s71
    %p77 = scmp.eq.s32.totalorder %s11, 0
    %p78 = por %p76, %p77
    %p79 = scmp.ne.s32.totalorder %s68, %s71
    %p80 = scmp.eq.s32.totalorder %s16, 3
    %p81 = por %p79, %p80
    %p82 = scmp.ne.s32.totalorder %s71, %s72
    %p83 = scmp.eq.s32.totalorder %s16, 0
    %p84 = por %p82, %p83
    %p85 = scmp.ne.s32.totalorder %s71, %s72
    %p86 = scmp.eq.s32.totalorder %s17, 3
    %p87 = por %p85, %p86
    %p89 = scmp.ne.s32.totalorder %s72, %s88
    %p90 = scmp.eq.s32.totalorder %s17, 0
    %p91 = por %p89, %p90
    %s92 = ssub.s32 %s11, %s18
    %p93 = scmp.eq.s32.totalorder %s92, 0
    %s95 = sadd.s32 %s94, 1
    %s96 = scalar_select %p93, %s94, %s95
    %p99 = pneg %p93
    %p100 = scmp.eq.s32.totalorder %s11, 3
    %p101 = por %p99, %p100
    %p102 = scmp.ne.s32.totalorder %s94, %s97
    %p103 = scmp.eq.s32.totalorder %s11, 0
    %p104 = por %p102, %p103
    %p105 = scmp.ne.s32.totalorder %s94, %s97
    %p106 = scmp.eq.s32.totalorder %s16, 3
    %p107 = por %p105, %p106
    %p108 = scmp.ne.s32.totalorder %s97, %s98
    %p109 = scmp.eq.s32.totalorder %s16, 0
    %p110 = por %p108, %p109
    %p111 = scmp.ne.s32.totalorder %s97, %s98
    %p112 = scmp.eq.s32.totalorder %s17, 3
    %p113 = por %p111, %p112
    %p115 = scmp.ne.s32.totalorder %s98, %s114
    %p116 = scmp.eq.s32.totalorder %s17, 0
    %p117 = por %p115, %p116
    %s118 = ssub.s32 %s11, %s18
    %p119 = scmp.eq.s32.totalorder %s118, 0
    %s121 = sadd.s32 %s120, 1
    %s122 = scalar_select %p119, %s120, %s121
    %p125 = pneg %p119
    %p126 = scmp.eq.s32.totalorder %s11, 3
    %p127 = por %p125, %p126
    %p128 = scmp.ne.s32.totalorder %s120, %s123
    %p129 = scmp.eq.s32.totalorder %s11, 0
    %p130 = por %p128, %p129
    %p131 = scmp.ne.s32.totalorder %s120, %s123
    %p132 = scmp.eq.s32.totalorder %s16, 3
    %p133 = por %p131, %p132
    %p134 = scmp.ne.s32.totalorder %s123, %s124
    %p135 = scmp.eq.s32.totalorder %s16, 0
    %p136 = por %p134, %p135
    %p137 = scmp.ne.s32.totalorder %s123, %s124
    %p138 = scmp.eq.s32.totalorder %s17, 3
    %p139 = por %p137, %p138
    %p141 = scmp.ne.s32.totalorder %s124, %s140
    %p142 = scmp.eq.s32.totalorder %s17, 0
    %p143 = por %p141, %p142
    %p144 = scmp.le.s32.totalorder 1, %s11
    %p145 = scmp.lt.s32.totalorder %s11, 5
    %p146 = pnand %p144, %p145
    %p147 = pneg %p146
    // Predicated region
    $region9: #{conv_bn_relu_forward.2} parent=5 // pred_check
      _
    $region10: #{conv_bn_relu_forward.2} parent=5 // pred_check_branch
      %149 = sbr.rel (%p146) target = $region12
    $region11: #{conv_bn_relu_forward.2} parent=5 // pred_region
      %s150 = ssub.s32 %s11, 1
      // Predicated region
      $region13: #{conv_bn_relu_forward.2} parent=11 // pred_check
        %p151 = pneg %p58
      $region14: #{conv_bn_relu_forward.2} parent=11 // pred_check_branch
        %153 = sbr.rel (%p151) target = $region16
      $region15: #{conv_bn_relu_forward.2} parent=11 // pred_region
        _
      $region16: #{conv_bn_relu_forward.2} parent=11 // pred_fallthru
        _
    $region12: #{conv_bn_relu_forward.2} parent=5 // pred_fallthru
      _
    %p154 = scmp.lt.s32.totalorder %s11, 4
    // Predicated region
    $region17: #{conv_bn_relu_forward.2} parent=5 // pred_check
      %p155 = pneg %p154
    $region18: #{conv_bn_relu_forward.2} parent=5 // pred_check_branch
      %157 = sbr.rel (%p155) target = $region20
    $region19: #{conv_bn_relu_forward.2} parent=5 // pred_region
      // Predicated region
      $region21: #{conv_bn_relu_forward.2} parent=19 // pred_check
        %p158 = pneg %p31
      $region22: #{conv_bn_relu_forward.2} parent=19 // pred_check_branch
        %160 = sbr.rel (%p158) target = $region24
      $region23: #{conv_bn_relu_forward.2} parent=19 // pred_region
        %s161 = smul.u32 16, %s11
        %p162 = scmp.lt.s32.totalorder %s161, 63
        %s163 = scalar_select %p162, %s161, 63
        %s164 = smul.addr %s163, 4
        %s165 = scalar_lea.vmem %s0, %s164
        %s166 = smul.u32 16, %s11
      $region24: #{conv_bn_relu_forward.2} parent=19 // pred_fallthru
        _
    $region20: #{conv_bn_relu_forward.2} parent=5 // pred_fallthru
      _
    %p167 = scmp.le.s32.totalorder 1, %s11
    %p168 = scmp.lt.s32.totalorder %s11, 5
    %p169 = pnand %p167, %p168
    %p170 = pneg %p169
    // Predicated region
    $region25: #{conv_bn_relu_forward.2} parent=5 // pred_check
      _
    $region26: #{conv_bn_relu_forward.2} parent=5 // pred_check_branch
      %172 = sbr.rel (%p169) target = $region28
    $region27: #{conv_bn_relu_forward.2} parent=5 // pred_region
      %s173 = ssub.s32 %s11, 1
      %s174 = smul.u32 16, %s16
      %p175 = scmp.lt.s32.totalorder %s174, 63
      %s176 = scalar_select %p175, %s174, 63
      %s177 = smul.addr %s176, 4
      %s178 = scalar_lea.vmem %s0, %s177
      %p179 = pneg %p37
      %p180 = pneg %p34
      %p181 = pneg %p58
      %p182 = pneg %p55
      %p183 = pneg %p84
      %p184 = pneg %p81
      %s185 = smul.u32 16, %s16
      %p186 = scmp.lt.s32.totalorder %s185, 63
      %s187 = scalar_select %p186, %s185, 63
      %s188 = smul.addr %s187, 4
      %s189 = scalar_lea.vmem %s2, %s188
      %p190 = pneg %p110
      %p191 = pneg %p107
      %p192 = scmp.lt.s32.totalorder %s16, 3
      %s193 = scalar_select %p192, %s16, 3
      %s194 = scalar_lea.vmem %s3, %s193
      %p195 = pneg %p136
      %p196 = pneg %p133
      %p197 = scmp.lt.s32.totalorder %s16, 3
      %s198 = scalar_select %p197, %s16, 3
      %s199 = scalar_lea.vmem %s4, %s198
      %s200 = smul.u32 16, %s16
      %p201 = scmp.lt.s32.totalorder %s200, 63
      %s202 = scalar_select %p201, %s200, 63
      %s203 = smul.addr %s202, 4
      %s204 = scalar_lea.vmem %s0, %s203
      %s205 = smul.u32 16, %s16
      %s206 = smul.u32 16, %s16
      %p207 = scmp.lt.s32.totalorder %s206, 63
      %s208 = scalar_select %p207, %s206, 63
      %s209 = smul.addr %s208, 4
      %s210 = scalar_lea.vmem %s2, %s209
      %s211 = smul.u32 16, %s16
      %p212 = scmp.lt.s32.totalorder %s16, 3
      %s213 = scalar_select %p212, %s16, 3
      %s214 = scalar_lea.vmem %s3, %s213
      %p215 = scmp.lt.s32.totalorder %s16, 3
      %s216 = scalar_select %p215, %s16, 3
      %s217 = scalar_lea.vmem %s4, %s216
      %v219 = vld [vmem:[%s204] sm:$0xf]
      %v220 = vld [vmem:[%s204 + $0x4] sm:$0xf]
      %v221 = vld [vmem:[%s204 + $0x8] sm:$0xf]
      %v222 = vld [vmem:[%s204 + $0xc] sm:$0xf]
      %v223 = vld [vmem:[%s204 + $0x10] sm:$0xf]
      %v224 = vld [vmem:[%s204 + $0x14] sm:$0xf]
      %v225 = vld [vmem:[%s204 + $0x18] sm:$0xf]
      %v226 = vld [vmem:[%s204 + $0x1c] sm:$0xf]
      %v227 = vld [vmem:[%s204 + $0x20] sm:$0xf]
      %v228 = vld [vmem:[%s204 + $0x24] sm:$0xf]
      %v229 = vld [vmem:[%s204 + $0x28] sm:$0xf]
      %v230 = vld [vmem:[%s204 + $0x2c] sm:$0xf]
      %v231 = vld [vmem:[%s204 + $0x30] sm:$0xf]
      %v232 = vld [vmem:[%s204 + $0x34] sm:$0xf]
      %v233 = vld [vmem:[%s204 + $0x38] sm:$0xf]
      %v234 = vld [vmem:[%s204 + $0x3c] sm:$0xf]
      %v235 = vld [vmem:[%s1] sm:$0xf]
      %v236 = vld [vmem:[%s1 + $0x4] sm:$0xf]
      %v237 = vld [vmem:[%s1 + $0x8] sm:$0xf]
      %v238 = vld [vmem:[%s1 + $0xc] sm:$0xf]
      %v239 = vld [vmem:[%s1 + $0x10] sm:$0xf]
      %v240 = vld [vmem:[%s1 + $0x14] sm:$0xf]
      %v241 = vld [vmem:[%s1 + $0x18] sm:$0xf]
      %v242 = vld [vmem:[%s1 + $0x1c] sm:$0xf]
      %v243 = vld [vmem:[%s1 + $0x20] sm:$0xf]
      %v244 = vld [vmem:[%s1 + $0x24] sm:$0xf]
      %v245 = vld [vmem:[%s1 + $0x28] sm:$0xf]
      %v246 = vld [vmem:[%s1 + $0x2c] sm:$0xf]
      %v247 = vld [vmem:[%s1 + $0x30] sm:$0xf]
      %v248 = vld [vmem:[%s1 + $0x34] sm:$0xf]
      %v249 = vld [vmem:[%s1 + $0x38] sm:$0xf]
      %v250 = vld [vmem:[%s1 + $0x3c] sm:$0xf]
      %v267 = vunpack.c.l.b16 %v219
      %v268 = vunpack.c.l.b16 %v220
      %v269 = vunpack.c.l.b16 %v221
      %v270 = vunpack.c.l.b16 %v222
      %v271 = vunpack.c.l.b16 %v223
      %v272 = vunpack.c.l.b16 %v224
      %v273 = vunpack.c.l.b16 %v225
      %v274 = vunpack.c.l.b16 %v226
      %v275 = vunpack.c.l.b16 %v227
      %v276 = vunpack.c.l.b16 %v228
      %v277 = vunpack.c.l.b16 %v229
      %v278 = vunpack.c.l.b16 %v230
      %v279 = vunpack.c.l.b16 %v231
      %v280 = vunpack.c.l.b16 %v232
      %v281 = vunpack.c.l.b16 %v233
      %v282 = vunpack.c.l.b16 %v234
      %v283 = vpack.c.b16 %v268, %v267
      %v284 = vpack.c.b16 %v270, %v269
      %v285 = vpack.c.b16 %v272, %v271
      %v286 = vpack.c.b16 %v274, %v273
      %v287 = vpack.c.b16 %v276, %v275
      %v288 = vpack.c.b16 %v278, %v277
      %v289 = vpack.c.b16 %v280, %v279
      %v290 = vpack.c.b16 %v282, %v281
      %v315 = vunpack.c.l.b16 %v235
      %v316 = vunpack.c.l.b16 %v236
      %v317 = vunpack.c.l.b16 %v237
      %v318 = vunpack.c.l.b16 %v238
      %v319 = vunpack.c.l.b16 %v239
      %v320 = vunpack.c.l.b16 %v240
      %v321 = vunpack.c.l.b16 %v241
      %v322 = vunpack.c.l.b16 %v242
      %v323 = vunpack.c.l.b16 %v243
      %v324 = vunpack.c.l.b16 %v244
      %v325 = vunpack.c.l.b16 %v245
      %v326 = vunpack.c.l.b16 %v246
      %v327 = vunpack.c.l.b16 %v247
      %v328 = vunpack.c.l.b16 %v248
      %v329 = vunpack.c.l.b16 %v249
      %v330 = vunpack.c.l.b16 %v250
      %v331 = vpack.c.b16 %v316, %v315
      %v332 = vpack.c.b16 %v318, %v317
      %v333 = vpack.c.b16 %v320, %v319
      %v334 = vpack.c.b16 %v322, %v321
      %v335 = vpack.c.b16 %v324, %v323
      %v336 = vpack.c.b16 %v326, %v325
      %v337 = vpack.c.b16 %v328, %v327
      %v338 = vpack.c.b16 %v330, %v329
      %347 = vmatprep.subr.bf16.mxu0 0
      %348 = vmatpush1.bf16.msra.mxu0 %v331
      %349 = vmatprep.subr.bf16.mxu0 0
      %350 = vmatpush1.bf16.msra.mxu0 %v332
      %351 = vmatprep.subr.bf16.mxu0 0
      %352 = vmatpush1.bf16.msra.mxu0 %v333
      %353 = vmatprep.subr.bf16.mxu0 0
      %354 = vmatpush1.bf16.msra.mxu0 %v334
      %355 = vmatprep.subr.bf16.mxu0 0
      %356 = vmatpush1.bf16.msra.mxu0 %v335
      %357 = vmatprep.subr.bf16.mxu0 0
      %358 = vmatpush1.bf16.msra.mxu0 %v336
      %359 = vmatprep.subr.bf16.mxu0 0
      %360 = vmatpush1.bf16.msra.mxu0 %v337
      %361 = vmatprep.subr.bf16.mxu0 0
      %362 = vmatpush1.bf16.msra.mxu0 %v338
      %363 = vmatprep.subr.bf16.mxu0 0
      %364 = vmatpush1.bf16.msra.mxu0 0
      %365 = vmatprep.subr.bf16.mxu0 0
      %366 = vmatpush1.bf16.msra.mxu0 0
      %367 = vmatprep.subr.bf16.mxu0 0
      %368 = vmatpush1.bf16.msra.mxu0 0
      %369 = vmatprep.subr.bf16.mxu0 0
      %370 = vmatpush1.bf16.msra.mxu0 0
      %371 = vmatprep.subr.bf16.mxu0 0
      %372 = vmatpush1.bf16.msra.mxu0 0
      %373 = vmatprep.subr.bf16.mxu0 0
      %374 = vmatpush1.bf16.msra.mxu0 0
      %375 = vmatprep.subr.bf16.mxu0 0
      %376 = vmatpush1.bf16.msra.mxu0 0
      %377 = vmatprep.subr.bf16.mxu0 0
      %378 = vmatpush1.bf16.msra.mxu0 0
      %379 = vmatprep.mubr.bf16.mxu0 0
      %380 = vmatmul.mubr.bf16.gmra.mrb[0].mxu0 %v283
      %v381 = vpop.f32.mrb[0].mxu0
      %v382 = vadd.f32 0.0, %v381
      %v383 = vpop.f32.mrb[0].mxu0
      %v384 = vpop.f32.mrb[0].mxu0
      %v385 = vadd.f32 0.0, %v384
      %v386 = vpop.f32.mrb[0].mxu0
      %387 = vmatprep.mubr.bf16.mxu0 0
      %388 = vmatmul.mubr.bf16.gmra.mrb[0].mxu0 %v284
      %v389 = vpop.f32.mrb[0].mxu0
      %v390 = vadd.f32 0.0, %v389
      %v391 = vpop.f32.mrb[0].mxu0
      %v392 = vpop.f32.mrb[0].mxu0
      %v393 = vadd.f32 0.0, %v392
      %v394 = vpop.f32.mrb[0].mxu0
      %395 = vmatprep.mubr.bf16.mxu0 0
      %396 = vmatmul.mubr.bf16.gmra.mrb[0].mxu0 %v285
      %v397 = vpop.f32.mrb[0].mxu0
      %v398 = vadd.f32 0.0, %v397
      %v399 = vpop.f32.mrb[0].mxu0
      %v400 = vpop.f32.mrb[0].mxu0
      %v401 = vadd.f32 0.0, %v400
      %v402 = vpop.f32.mrb[0].mxu0
      %403 = vmatprep.mubr.bf16.mxu0 0
      %404 = vmatmul.mubr.bf16.gmra.mrb[0].mxu0 %v286
      %v405 = vpop.f32.mrb[0].mxu0
      %v406 = vadd.f32 0.0, %v405
      %v407 = vpop.f32.mrb[0].mxu0
      %v408 = vpop.f32.mrb[0].mxu0
      %v409 = vadd.f32 0.0, %v408
      %v410 = vpop.f32.mrb[0].mxu0
      %411 = vmatprep.mubr.bf16.mxu0 0
      %412 = vmatmul.mubr.bf16.gmra.mrb[0].mxu0 %v287
      %v413 = vpop.f32.mrb[0].mxu0
      %v414 = vadd.f32 0.0, %v413
      %v415 = vpop.f32.mrb[0].mxu0
      %v416 = vpop.f32.mrb[0].mxu0
      %v417 = vadd.f32 0.0, %v416
      %v418 = vpop.f32.mrb[0].mxu0
      %419 = vmatprep.mubr.bf16.mxu0 0
      %420 = vmatmul.mubr.bf16.gmra.mrb[0].mxu0 %v288
      %v421 = vpop.f32.mrb[0].mxu0
      %v422 = vadd.f32 0.0, %v421
      %v423 = vpop.f32.mrb[0].mxu0
      %v424 = vpop.f32.mrb[0].mxu0
      %v425 = vadd.f32 0.0, %v424
      %v426 = vpop.f32.mrb[0].mxu0
      %427 = vmatprep.mubr.bf16.mxu0 0
      %428 = vmatmul.mubr.bf16.gmra.mrb[0].mxu0 %v289
      %v429 = vpop.f32.mrb[0].mxu0
      %v430 = vadd.f32 0.0, %v429
      %v431 = vpop.f32.mrb[0].mxu0
      %v432 = vpop.f32.mrb[0].mxu0
      %v433 = vadd.f32 0.0, %v432
      %v434 = vpop.f32.mrb[0].mxu0
      %435 = vmatprep.mubr.bf16.mxu0 0
      %436 = vmatmul.mubr.bf16.gmra.mrb[0].mxu0 %v290
      %v437 = vpop.f32.mrb[0].mxu0
      %v438 = vadd.f32 0.0, %v437
      %v439 = vpop.f32.mrb[0].mxu0
      %v440 = vpop.f32.mrb[0].mxu0
      %v441 = vadd.f32 0.0, %v440
      %v442 = vpop.f32.mrb[0].mxu0
      %443 = vdwg.mxu0
      %v444 = vadd.f32 %v382, %v385
      %v445 = vadd.f32 %v444, %v390
      %v446 = vadd.f32 %v445, %v393
      %v447 = vadd.f32 %v446, %v398
      %v448 = vadd.f32 %v447, %v401
      %v449 = vadd.f32 %v448, %v406
      %v450 = vadd.f32 %v449, %v409
      %v451 = vadd.f32 %v450, %v414
      %v452 = vadd.f32 %v451, %v417
      %v453 = vadd.f32 %v452, %v422
      %v454 = vadd.f32 %v453, %v425
      %v455 = vadd.f32 %v454, %v430
      %v456 = vadd.f32 %v455, %v433
      %v457 = vadd.f32 %v456, %v438
      %v458 = vadd.f32 %v457, %v441
      %v459 = vrot.slane %v458, 4
      %v460 = vadd.f32 %v458, %v459
      %v461 = vrot.slane %v460, 2
      %v462 = vadd.f32 %v460, %v461
      %v463 = vrot.slane %v462, 1
      %v464 = vadd.f32 %v462, %v463
      %465 = vst [vmem:[%s214] sm:$0x1] %v464
      %v466 = vmul.f32 %v382, %v382
      %v467 = vmul.f32 %v385, %v385
      %v468 = vmul.f32 %v390, %v390
      %v469 = vmul.f32 %v393, %v393
      %v470 = vmul.f32 %v398, %v398
      %v471 = vmul.f32 %v401, %v401
      %v472 = vmul.f32 %v406, %v406
      %v473 = vmul.f32 %v409, %v409
      %v474 = vmul.f32 %v414, %v414
      %v475 = vmul.f32 %v417, %v417
      %v476 = vmul.f32 %v422, %v422
      %v477 = vmul.f32 %v425, %v425
      %v478 = vmul.f32 %v430, %v430
      %v479 = vmul.f32 %v433, %v433
      %v480 = vmul.f32 %v438, %v438
      %v481 = vmul.f32 %v441, %v441
      %v482 = vadd.f32 %v466, %v467
      %v483 = vadd.f32 %v482, %v468
      %v484 = vadd.f32 %v483, %v469
      %v485 = vadd.f32 %v484, %v470
      %v486 = vadd.f32 %v485, %v471
      %v487 = vadd.f32 %v486, %v472
      %v488 = vadd.f32 %v487, %v473
      %v489 = vadd.f32 %v488, %v474
      %v490 = vadd.f32 %v489, %v475
      %v491 = vadd.f32 %v490, %v476
      %v492 = vadd.f32 %v491, %v477
      %v493 = vadd.f32 %v492, %v478
      %v494 = vadd.f32 %v493, %v479
      %v495 = vadd.f32 %v494, %v480
      %v496 = vadd.f32 %v495, %v481
      %v497 = vrot.slane %v496, 4
      %v498 = vadd.f32 %v496, %v497
      %v499 = vrot.slane %v498, 2
      %v500 = vadd.f32 %v498, %v499
      %v501 = vrot.slane %v500, 1
      %v502 = vadd.f32 %v500, %v501
      %503 = vst [vmem:[%s217] sm:$0x1] %v502
      %v504 = vpack.c.bf16 %v385, %v382
      %v505 = vpack.c.bf16 %v393, %v390
      %v506 = vpack.c.bf16 %v401, %v398
      %v507 = vpack.c.bf16 %v409, %v406
      %v508 = vpack.c.bf16 %v417, %v414
      %v509 = vpack.c.bf16 %v425, %v422
      %v510 = vpack.c.bf16 %v433, %v430
      %v511 = vpack.c.bf16 %v441, %v438
      %v520 = vunpack.c.l.b16 %v504
      %v521 = vunpack.c.h.b16 %v504
      %v522 = vunpack.c.l.b16 %v505
      %v523 = vunpack.c.h.b16 %v505
      %v524 = vunpack.c.l.b16 %v506
      %v525 = vunpack.c.h.b16 %v506
      %v526 = vunpack.c.l.b16 %v507
      %v527 = vunpack.c.h.b16 %v507
      %v528 = vunpack.c.l.b16 %v508
      %v529 = vunpack.c.h.b16 %v508
      %v530 = vunpack.c.l.b16 %v509
      %v531 = vunpack.c.h.b16 %v509
      %v532 = vunpack.c.l.b16 %v510
      %v533 = vunpack.c.h.b16 %v510
      %v534 = vunpack.c.l.b16 %v511
      %v535 = vunpack.c.h.b16 %v511
      %v536 = vpack.c.b16 %v520, %v520
      %v537 = vpack.c.b16 %v521, %v521
      %v538 = vpack.c.b16 %v522, %v522
      %v539 = vpack.c.b16 %v523, %v523
      %v540 = vpack.c.b16 %v524, %v524
      %v541 = vpack.c.b16 %v525, %v525
      %v542 = vpack.c.b16 %v526, %v526
      %v543 = vpack.c.b16 %v527, %v527
      %v544 = vpack.c.b16 %v528, %v528
      %v545 = vpack.c.b16 %v529, %v529
      %v546 = vpack.c.b16 %v530, %v530
      %v547 = vpack.c.b16 %v531, %v531
      %v548 = vpack.c.b16 %v532, %v532
      %v549 = vpack.c.b16 %v533, %v533
      %v550 = vpack.c.b16 %v534, %v534
      %v551 = vpack.c.b16 %v535, %v535
      %568 = vst [vmem:[%s210] sm:$0xf] %v536
      %569 = vst [vmem:[%s210 + $0x4] sm:$0xf] %v537
      %570 = vst [vmem:[%s210 + $0x8] sm:$0xf] %v538
      %571 = vst [vmem:[%s210 + $0xc] sm:$0xf] %v539
      %572 = vst [vmem:[%s210 + $0x10] sm:$0xf] %v540
      %573 = vst [vmem:[%s210 + $0x14] sm:$0xf] %v541
      %574 = vst [vmem:[%s210 + $0x18] sm:$0xf] %v542
      %575 = vst [vmem:[%s210 + $0x1c] sm:$0xf] %v543
      %576 = vst [vmem:[%s210 + $0x20] sm:$0xf] %v544
      %577 = vst [vmem:[%s210 + $0x24] sm:$0xf] %v545
      %578 = vst [vmem:[%s210 + $0x28] sm:$0xf] %v546
      %579 = vst [vmem:[%s210 + $0x2c] sm:$0xf] %v547
      %580 = vst [vmem:[%s210 + $0x30] sm:$0xf] %v548
      %581 = vst [vmem:[%s210 + $0x34] sm:$0xf] %v549
      %582 = vst [vmem:[%s210 + $0x38] sm:$0xf] %v550
      %583 = vst [vmem:[%s210 + $0x3c] sm:$0xf] %v551
      %s584 = smul.u32 16, %s16
      %p585 = scmp.lt.s32.totalorder %s584, 63
      %s586 = scalar_select %p585, %s584, 63
      %s587 = smul.addr %s586, 4
      %s588 = scalar_lea.vmem %s2, %s587
      %p589 = scmp.lt.s32.totalorder %s16, 3
      %s590 = scalar_select %p589, %s16, 3
      %s591 = scalar_lea.vmem %s3, %s590
      %p592 = scmp.lt.s32.totalorder %s16, 3
      %s593 = scalar_select %p592, %s16, 3
      %s594 = scalar_lea.vmem %s4, %s593
      // Predicated region
      $region29: #{conv_bn_relu_forward.2} parent=27 // pred_check
        %p595 = pneg %p81
      $region30: #{conv_bn_relu_forward.2} parent=27 // pred_check_branch
        %597 = sbr.rel (%p595) target = $region32
      $region31: #{conv_bn_relu_forward.2} parent=27 // pred_region
        %s598 = smul.u32 16, %s16
      $region32: #{conv_bn_relu_forward.2} parent=27 // pred_fallthru
        _
      // Predicated region
      $region33: #{conv_bn_relu_forward.2} parent=27 // pred_check
        %p599 = pneg %p107
      $region34: #{conv_bn_relu_forward.2} parent=27 // pred_check_branch
        %601 = sbr.rel (%p599) target = $region36
      $region35: #{conv_bn_relu_forward.2} parent=27 // pred_region
        _
      $region36: #{conv_bn_relu_forward.2} parent=27 // pred_fallthru
        _
      // Predicated region
      $region37: #{conv_bn_relu_forward.2} parent=27 // pred_check
        %p602 = pneg %p133
      $region38: #{conv_bn_relu_forward.2} parent=27 // pred_check_branch
        %604 = sbr.rel (%p602) target = $region40
      $region39: #{conv_bn_relu_forward.2} parent=27 // pred_region
        _
      $region40: #{conv_bn_relu_forward.2} parent=27 // pred_fallthru
        _
    $region28: #{conv_bn_relu_forward.2} parent=5 // pred_fallthru
      _
    %p605 = scmp.le.s32.totalorder 2, %s11
    // Predicated region
    $region41: #{conv_bn_relu_forward.2} parent=5 // pred_check
      %p606 = pneg %p605
    $region42: #{conv_bn_relu_forward.2} parent=5 // pred_check_branch
      %608 = sbr.rel (%p606) target = $region44
    $region43: #{conv_bn_relu_forward.2} parent=5 // pred_region
      %s609 = ssub.s32 %s11, 2
      // Predicated region
      $region45: #{conv_bn_relu_forward.2} parent=43 // pred_check
        %p610 = pneg %p87
      $region46: #{conv_bn_relu_forward.2} parent=43 // pred_check_branch
        %612 = sbr.rel (%p610) target = $region48
      $region47: #{conv_bn_relu_forward.2} parent=43 // pred_region
        %s613 = smul.u32 16, %s17
        %p614 = scmp.lt.s32.totalorder %s613, 63
        %s615 = scalar_select %p614, %s613, 63
        %s616 = smul.addr %s615, 4
        %s617 = scalar_lea.vmem %s2, %s616
      $region48: #{conv_bn_relu_forward.2} parent=43 // pred_fallthru
        _
      // Predicated region
      $region49: #{conv_bn_relu_forward.2} parent=43 // pred_check
        %p618 = pneg %p113
      $region50: #{conv_bn_relu_forward.2} parent=43 // pred_check_branch
        %620 = sbr.rel (%p618) target = $region52
      $region51: #{conv_bn_relu_forward.2} parent=43 // pred_region
        %p621 = scmp.lt.s32.totalorder %s17, 3
        %s622 = scalar_select %p621, %s17, 3
        %s623 = scalar_lea.vmem %s3, %s622
      $region52: #{conv_bn_relu_forward.2} parent=43 // pred_fallthru
        _
      // Predicated region
      $region53: #{conv_bn_relu_forward.2} parent=43 // pred_check
        %p624 = pneg %p139
      $region54: #{conv_bn_relu_forward.2} parent=43 // pred_check_branch
        %626 = sbr.rel (%p624) target = $region56
      $region55: #{conv_bn_relu_forward.2} parent=43 // pred_region
        %p627 = scmp.lt.s32.totalorder %s17, 3
        %s628 = scalar_select %p627, %s17, 3
        %s629 = scalar_lea.vmem %s4, %s628
      $region56: #{conv_bn_relu_forward.2} parent=43 // pred_fallthru
        _
    $region44: #{conv_bn_relu_forward.2} parent=5 // pred_fallthru
      _
  $region6: #{conv_bn_relu_forward.2} parent=0 // loop_footer
    %s15 = sadd.s32 1, %s11
  $region7: #{conv_bn_relu_forward.2} parent=0 // loop_footer_branch
    %10 = sbr.rel target = $region3
  $region8: #{conv_bn_relu_forward.2} parent=0 // loop_exit
    _

</llo_original>
